<compile_context>
chip_gen: v7x
topology: tpu7x:2x2x1
jax: 0.10.0
libtpu: 0.0.40
codegen_flags: <defaults>
</compile_context>

<pallas_src>
import functools

import jax
import jax.numpy as jnp
from jax.experimental import pallas as pl
from jax.experimental.pallas import tpu as pltpu


def _copy_kernel(x_ref, o_ref):
    # One full-tile load, one unmasked lane-dense store.  No VALU filler
    # (v5e's single vector-store slot is the binding unit for a pure copy).
    o_ref[...] = x_ref[...]


def _lane_dense_shape(total_elems: int):
    """Pick (rows, lanes) with lanes a large multiple of 128 dividing total.

    Element order does not matter for an identity copy, so we are free to
    re-slab the flattened array into any (rows, lanes) factorization.
    """
    for lanes in (8192, 4096, 2048, 1024, 512, 256, 128):
        if total_elems % lanes == 0:
            return total_elems // lanes, lanes
    return None  # caller falls back to a single full-extent block


def _pick_tile_rows(rows: int, row_bytes: int, target_bytes: int = 6 << 20) -> int:
    """Row-block size: multiple of 8 (sublane alignment), ~4-8 MiB per tile,
    divides `rows` (no ragged trailing block), and leaves >= 2 grid steps when
    the array is large enough for the pipeline to overlap anything."""
    if rows <= 8:
        return rows
    tile = min(rows, max(8, (target_bytes // max(row_bytes, 1)) // 8 * 8))
    # Keep at least 2 steps so prefetch/writeback has something to overlap.
    if tile >= rows and rows >= 16:
        tile = max(8, (rows // 2) // 8 * 8)
    # Shrink to a divisor of rows.
    while tile > 8 and rows % tile != 0:
        tile -= 8
    if rows % tile != 0:
        tile = rows
    return tile


@jax.jit
def _identity_copy_kernel_path(x):
    """Roofline-tuned Pallas copy (demonstration path; zero-copy is default)."""
    shape, dtype = x.shape, x.dtype
    total = x.size
    itemsize = jnp.dtype(dtype).itemsize

    rc = _lane_dense_shape(total)
    if rc is None:
        # TODO(synk): total element count not a multiple of 128 — fall back to
        # a single full-extent 2D block (always legal, but lanes may be masked).
        rows, lanes = total // shape[-1], shape[-1]
        tile_rows = rows
    else:
        rows, lanes = rc
        tile_rows = _pick_tile_rows(rows, lanes * itemsize)

    # Under jit this reshape is layout plumbing on a contiguous buffer.
    x2 = x.reshape(rows, lanes)
    grid = (rows // tile_rows,)
    total_bytes = total * itemsize

    # Double-buffered in + out tiles, plus headroom; capped at 32 MiB so it is
    # valid on v7x (64 MiB physical) and v5e (16 MiB scoped default raised).
    footprint = 4 * tile_rows * lanes * itemsize
    vmem_limit = max(16 << 20, min(int(1.5 * footprint) + (4 << 20), 32 << 20))

    out2 = pl.pallas_call(
        _copy_kernel,
        out_shape=jax.ShapeDtypeStruct((rows, lanes), dtype),
        grid=grid,
        in_specs=[pl.BlockSpec((tile_rows, lanes), lambda i: (i, 0))],
        out_specs=pl.BlockSpec((tile_rows, lanes), lambda i: (i, 0)),
        compiler_params=pltpu.CompilerParams(
            dimension_semantics=("parallel",),   # megacore split on v7x
            vmem_limit_bytes=vmem_limit,
        ),
        cost_estimate=pl.CostEstimate(
            flops=0, transcendentals=0, bytes_accessed=2 * total_bytes),
    )(x2)

    return out2.reshape(shape)


def dummy_transformer_block(x, *, use_kernel: bool = False):
    """Pallas implementation of DummyTransformerBlock.forward (identity).

    Default (use_kernel=False) is the optimal lowering: return `x` directly —
    zero HBM traffic, no buffer donation.  `use_kernel=True` runs the
    lane-dense, tiled Pallas copy kernel instead.
    """
    if not use_kernel:
        return x
    return _identity_copy_kernel_path(x)


if __name__ == "__main__":
    # DummyTransformerBlock.__init__ takes a cfg but defines no parameters,
    # so there is nothing to initialize.
    key = jax.random.PRNGKey(0)
    batch, seq, emb = 2, 8, 32
    x = jax.random.normal(key, (batch, seq, emb), dtype=jnp.float32)
    expected = jnp.copy(x)

    # Default path: optimal zero-copy identity.
    y = jax.block_until_ready(dummy_transformer_block(x))
    assert y.shape == expected.shape and y.dtype == expected.dtype
    assert jnp.array_equal(y, expected), "identity forward mismatch (zero-copy path)"

    # Kernel path: lane-dense tiled Pallas copy (exercised once for coverage).
    z = jax.block_until_ready(dummy_transformer_block(x, use_kernel=True))
    assert z.shape == expected.shape and z.dtype == expected.dtype
    assert jnp.array_equal(z, expected), "identity forward mismatch (kernel path)"

    print("KERNEL_OK")
</pallas_src>

<mosaic_0001>
module attributes {stable_mosaic.version = 11 : i64} {
  func.func @_copy_kernel(%arg0: i32, %arg1: memref<1x512xf32, #tpu.memory_space<vmem>>, %arg2: memref<1x512xf32, #tpu.memory_space<vmem>>) attributes {dimension_semantics = [#tpu.dimension_semantics<parallel>], iteration_bounds = array<i64: 1>, scalar_prefetch = 0 : i64, scratch_operands = 0 : i64, tpu.core_type = #tpu.core_type<tc>, window_params = [{transform_indices = @transform_0, window_bounds = array<i64: 1, 512>}, {transform_indices = @transform_1, window_bounds = array<i64: 1, 512>}]} {
    %c0 = arith.constant 0 : index
    %c0_0 = arith.constant 0 : index
    %0 = vector.load %arg1[%c0, %c0_0] : memref<1x512xf32, #tpu.memory_space<vmem>>, vector<1x512xf32>
    %c0_1 = arith.constant 0 : index
    %c0_2 = arith.constant 0 : index
    %1 = vector.load %arg2[%c0_1, %c0_2] : memref<1x512xf32, #tpu.memory_space<vmem>>, vector<1x512xf32>
    tpu.vector_store %arg2[%c0_1, %c0_2], %0 {strides = array<i32>} : memref<1x512xf32, #tpu.memory_space<vmem>>, vector<1x512xf32>,
    return
  }
  func.func @transform_0(%arg0: i32) -> (i32, i32) {
    %c0_i32 = arith.constant 0 : i32
    %c0_i32_0 = arith.constant 0 : i32
    return %arg0, %c0_i32 : i32, i32
  }
  func.func @transform_1(%arg0: i32) -> (i32, i32) {
    %c0_i32 = arith.constant 0 : i32
    %c0_i32_0 = arith.constant 0 : i32
    return %arg0, %c0_i32 : i32, i32
  }
}

</mosaic_0001>

<llo_original>
// kernel: _identity_copy_kernel_path.1
$region0: #{_identity_copy_kernel_path.1}
  #allocation0 [shape = 'u32[]', space=smem, size = 0x4, offset = 0x4, fixed_abs, tag = 'smem constant byte address 0x4 - core index']
  #allocation1 [shape = 'u32[144,128]{1,0:T(1,128)}', space=vmem, size = 0x12000, scoped, tag = 'internal scratch']
  %s0 = inlined_call_operand.vmem [shape: f32[1,512], index: 0, kind: input, shape index: {}]
  %s1 = inlined_call_operand.vmem [shape: f32[1,512], index: 1, kind: output, shape index: {}]
  %s2 = sld [smem:[#allocation0]]
  $region14: #{_identity_copy_kernel_path.1} parent=0
    _
  %s4 = ssub.s32 1, %s2
  %s5 = scalar_select 0, %s4, %s2
  // Predicated region
  $region2: #{_identity_copy_kernel_path.1} parent=0 // pred_check
    _
  $region3: #{_identity_copy_kernel_path.1} parent=0 // pred_check_branch
    %7 = sbr.rel (0) target = $region5
  $region4: #{_identity_copy_kernel_path.1} parent=0 // pred_region
    _
  $region5: #{_identity_copy_kernel_path.1} parent=0 // pred_fallthru
    _
  %v8 = vld [vmem:[%s0] sm:$0xf]
  %v9 = vlaneseq
  %vm10 = vcmp.ge.s32.totalorder %v9, 0
  %vm11 = vcmp.lt.s32.totalorder %v9, 512
  %vm12 = vmand %vm10, %vm11
  %13 = vst.msk [vmem:[%s1] sm:$0xf] %vm12, %v8
  // Predicated region
  $region6: #{_identity_copy_kernel_path.1} parent=0 // pred_check
    _
  $region7: #{_identity_copy_kernel_path.1} parent=0 // pred_check_branch
    %15 = sbr.rel (0) target = $region9
  $region8: #{_identity_copy_kernel_path.1} parent=0 // pred_region
    _
  $region9: #{_identity_copy_kernel_path.1} parent=0 // pred_fallthru
    _
  // Predicated region
  $region10: #{_identity_copy_kernel_path.1} parent=0 // pred_check
    _
  $region11: #{_identity_copy_kernel_path.1} parent=0 // pred_check_branch
    %17 = sbr.rel (0) target = $region13
  $region12: #{_identity_copy_kernel_path.1} parent=0 // pred_region
    _
  $region13: #{_identity_copy_kernel_path.1} parent=0 // pred_fallthru
    _

</llo_original>
